<compile_context>
chip_gen: v7x
topology: tpu7x:2x2x1
jax: 0.10.0
libtpu: 0.0.40
codegen_flags: <defaults>
</compile_context>

<pallas_src>
import functools

import jax
import jax.numpy as jnp
from jax.experimental import pallas as pl
from jax.experimental.pallas import tpu as pltpu

HIDDEN = 50


def mlp_kernel(x_ref, wh_ref, sv_ref, b6_ref, o_ref, *, compute_dtype):
    cd = compute_dtype
    # Batch on the lane axis: x is (1, TB), activations are (50, TB).
    x = x_ref[...].astype(cd)                     # (1, TB)

    w1 = sv_ref[0]                                # (50, 1) cd
    b1 = sv_ref[1]                                # (50, 1) cd
    # Layer 1 (in_features=1): K=1 matmul is degenerate on the MXU ->
    # VPU broadcast multiply-add; tanh on the EUP in `cd`.
    h = jnp.tanh(w1 * x + b1)                     # (50, TB) cd

    # Layers 2-5 (50x50): MXU matmuls with f32 accumulation; bias-add + tanh
    # in `cd` (bf16 on v6e/v7x halves the EUP-bound tanh work and the (50,TB)
    # intermediate footprint).
    for l in range(4):
        w = wh_ref[l]                             # (50, 50) cd
        b = sv_ref[2 + l]                         # (50, 1)  cd
        z = jnp.dot(w, h, preferred_element_type=jnp.float32)   # (50, TB) f32
        h = jnp.tanh(z.astype(cd) + b)            # (50, TB) cd

    # Layer 6 (out_features=1): N=1 matmul is degenerate -> elementwise multiply
    # + f32 sublane reduction (XLU); final bias kept in f32.
    w6 = sv_ref[6]                                # (50, 1) cd
    y = jnp.sum((w6 * h).astype(jnp.float32), axis=0, keepdims=True) + b6_ref[...]
    o_ref[...] = y.astype(o_ref.dtype)            # (1, TB) lane-dense store


def _round_up(n, m):
    return ((n + m - 1) // m) * m


def _default_compute_dtype():
    # bf16 VPU/EUP exists from v6e on; keep f32 on v5e and older chips.
    try:
        kind = jax.devices()[0].device_kind.lower()
    except Exception:
        return jnp.float32
    if "tpu" not in kind:
        return jnp.float32
    for old in ("v2", "v3", "v4", "v5"):
        if old in kind:
            return jnp.float32
    return jnp.bfloat16


def neural_network_prueba(x, params, *, block_b=8192, compute_dtype=None):
    """x: (B, 1) float32.  params: list of (W, b) with W: (in, out), b: (1, out),
    i.e. the math y = x @ W + b (identical to PyTorch's x @ W.T + b)."""
    if compute_dtype is None:
        compute_dtype = _default_compute_dtype()
    B = x.shape[0]

    (w1, b1), (w2, b2), (w3, b3), (w4, b4), (w5, b5), (w6, b6) = params
    # Kernel layout: weights (out, in) so hidden layers are h_new = W @ h; biases
    # as (50, 1) columns (cheap lane broadcast).  Pack everything into 3 operands.
    wh = jnp.stack([w2.T, w3.T, w4.T, w5.T]).astype(compute_dtype)               # (4, 50, 50)
    sv = jnp.stack([w1.T, b1.T, b2.T, b3.T, b4.T, b5.T, w6]).astype(compute_dtype)  # (7, 50, 1)
    b6 = b6.astype(jnp.float32)                                                   # (1, 1)

    # Batch tile: lane-dense (multiple of 128), as fat as block_b allows ...
    bp_min = _round_up(B, 128)
    tb = _round_up(min(block_b, bp_min), 128)
    # ... but keep >= 2 grid steps when the batch allows, so the "parallel"
    # batch axis can be sharded across both v7x TensorCores (harmless on
    # single-TC v5e/v6e: one extra ~0.35us step).
    if bp_min >= 2 * 128:
        tb = min(tb, _round_up(bp_min // 2, 128))
    Bp = _round_up(B, tb)

    xt = x.reshape(1, B)
    if Bp != B:
        xt = jnp.pad(xt, ((0, 0), (0, Bp - B)))

    grid = (Bp // tb,)
    io_spec = pl.BlockSpec((1, tb), lambda i: (0, i))
    # Weights/biases: whole-array blocks with constant index_maps -> fetched once,
    # VMEM-resident across every grid step.  (pipeline_mode=pl.Buffered(1) would
    # also drop their redundant second buffer; packing 12 operands into 3 already
    # removes nearly all of that bookkeeping, so it is skipped for portability.)
    w_specs = [
        pl.BlockSpec(wh.shape, lambda i: (0, 0, 0)),
        pl.BlockSpec(sv.shape, lambda i: (0, 0, 0)),
        pl.BlockSpec(b6.shape, lambda i: (0, 0)),
    ]

    weight_bytes = int(wh.size * wh.dtype.itemsize
                       + sv.size * sv.dtype.itemsize
                       + b6.size * b6.dtype.itemsize)
    cost = pl.CostEstimate(
        flops=2 * 4 * HIDDEN * HIDDEN * Bp + 4 * HIDDEN * Bp,
        transcendentals=5 * HIDDEN * Bp,
        bytes_accessed=8 * Bp + weight_bytes,
    )

    out_t = pl.pallas_call(
        functools.partial(mlp_kernel, compute_dtype=compute_dtype),
        out_shape=jax.ShapeDtypeStruct((1, Bp), jnp.float32),
        grid=grid,
        in_specs=[io_spec] + w_specs,
        out_specs=io_spec,
        compiler_params=pltpu.CompilerParams(
            dimension_semantics=("parallel",),
            vmem_limit_bytes=48 * 1024 * 1024),
        cost_estimate=cost,
    )(xt, wh, sv, b6)

    # Layout plumbing back to (B, 1) stays in the wrapper (cheap XLA op) so the
    # kernel's output store remains lane-dense.
    return out_t[:, :B].T


def init_params(key):
    """Deterministic init mimicking PyTorch nn.Linear default (U(-1/sqrt(in), 1/sqrt(in)))."""
    dims = [(1, HIDDEN), (HIDDEN, HIDDEN), (HIDDEN, HIDDEN),
            (HIDDEN, HIDDEN), (HIDDEN, HIDDEN), (HIDDEN, 1)]
    params = []
    for (fan_in, fan_out) in dims:
        key, kw, kb = jax.random.split(key, 3)
        bound = 1.0 / (fan_in ** 0.5)
        w = jax.random.uniform(kw, (fan_in, fan_out), jnp.float32, -bound, bound)
        b = jax.random.uniform(kb, (1, fan_out), jnp.float32, -bound, bound)
        params.append((w, b))
    return params


def reference_forward(x, params):
    h = x
    for i, (w, b) in enumerate(params):
        h = h @ w + b
        if i < len(params) - 1:
            h = jnp.tanh(h)
    return h


if __name__ == "__main__":
    key = jax.random.PRNGKey(0)
    key, kx, kx2 = jax.random.split(key, 3)
    params = init_params(key)

    # Tolerance: tight in the f32 path (v5e and older), relaxed for the bf16
    # activation path on v6e/v7x (~1e-2 expected drift through 5 tanh layers).
    cd = _default_compute_dtype()
    tol = 1e-4 if cd == jnp.float32 else 5e-2

    # Small batch (single padded 128-lane tile, grid=(1,)).
    B = 8
    x = jax.random.normal(kx, (B, 1), jnp.float32)
    out = jax.block_until_ready(neural_network_prueba(x, params))
    ref = reference_forward(x, params)
    assert out.shape == (B, 1)
    assert jnp.allclose(out, ref, atol=tol, rtol=tol), float(jnp.max(jnp.abs(out - ref)))

    # Multi-tile batch with a non-divisible remainder and a non-128-multiple
    # block_b: exercises forced 128-alignment, padding, and the >=2-step grid.
    B2 = 300
    x2 = jax.random.normal(kx2, (B2, 1), jnp.float32)
    out2 = jax.block_until_ready(neural_network_prueba(x2, params, block_b=200))
    ref2 = reference_forward(x2, params)
    assert out2.shape == (B2, 1)
    assert jnp.allclose(out2, ref2, atol=tol, rtol=tol), float(jnp.max(jnp.abs(out2 - ref2)))

    print("KERNEL_OK")
</pallas_src>

<mosaic_0001>
module attributes {stable_mosaic.version = 11 : i64} {
  func.func @mlp_kernel(%arg0: i32, %arg1: memref<1x128xf32, #tpu.memory_space<vmem>>, %arg2: memref<4x50x50xf32, #tpu.memory_space<vmem>>, %arg3: memref<7x50x1xf32, #tpu.memory_space<vmem>>, %arg4: memref<1x1xf32, #tpu.memory_space<vmem>>, %arg5: memref<1x128xf32, #tpu.memory_space<vmem>>) attributes {dimension_semantics = [#tpu.dimension_semantics<parallel>], iteration_bounds = array<i64: 1>, scalar_prefetch = 0 : i64, scratch_operands = 0 : i64, tpu.core_type = #tpu.core_type<tc>, window_params = [{transform_indices = @transform_0, window_bounds = array<i64: 1, 128>}, {pipeline_mode = #tpu.pipeline_mode<synchronous>, transform_indices = @transform_1, window_bounds = array<i64: 4, 50, 50>}, {pipeline_mode = #tpu.pipeline_mode<synchronous>, transform_indices = @transform_2, window_bounds = array<i64: 7, 50, 1>}, {pipeline_mode = #tpu.pipeline_mode<synchronous>, transform_indices = @transform_3, window_bounds = array<i64: 1, 1>}, {transform_indices = @transform_4, window_bounds = array<i64: 1, 128>}]} {
    %c0 = arith.constant 0 : index
    %c0_0 = arith.constant 0 : index
    %0 = vector.load %arg1[%c0, %c0_0] : memref<1x128xf32, #tpu.memory_space<vmem>>, vector<1x128xf32>
    %c0_1 = arith.constant 0 : index
    %c0_2 = arith.constant 0 : index
    %c0_3 = arith.constant 0 : index
    %1 = vector.load %arg3[%c0_1, %c0_2, %c0_3] : memref<7x50x1xf32, #tpu.memory_space<vmem>>, vector<1x50x1xf32>
    %2 = vector.shape_cast %1 : vector<1x50x1xf32> to vector<50x1xf32>
    %c1 = arith.constant 1 : index
    %c0_4 = arith.constant 0 : index
    %c0_5 = arith.constant 0 : index
    %3 = vector.load %arg3[%c1, %c0_4, %c0_5] : memref<7x50x1xf32, #tpu.memory_space<vmem>>, vector<1x50x1xf32>
    %4 = vector.shape_cast %3 : vector<1x50x1xf32> to vector<50x1xf32>
    %5 = vector.broadcast %2 : vector<50x1xf32> to vector<50x128xf32>
    %6 = vector.broadcast %0 : vector<1x128xf32> to vector<50x128xf32>
    %7 = arith.mulf %5, %6 : vector<50x128xf32>
    %8 = vector.broadcast %4 : vector<50x1xf32> to vector<50x128xf32>
    %9 = arith.addf %7, %8 : vector<50x128xf32>
    %10 = math.tanh %9 : vector<50x128xf32>
    %c0_6 = arith.constant 0 : index
    %c0_7 = arith.constant 0 : index
    %c0_8 = arith.constant 0 : index
    %11 = vector.load %arg2[%c0_6, %c0_7, %c0_8] : memref<4x50x50xf32, #tpu.memory_space<vmem>>, vector<1x50x50xf32>
    %12 = vector.shape_cast %11 : vector<1x50x50xf32> to vector<50x50xf32>
    %c2 = arith.constant 2 : index
    %c0_9 = arith.constant 0 : index
    %c0_10 = arith.constant 0 : index
    %13 = vector.load %arg3[%c2, %c0_9, %c0_10] : memref<7x50x1xf32, #tpu.memory_space<vmem>>, vector<1x50x1xf32>
    %14 = vector.shape_cast %13 : vector<1x50x1xf32> to vector<50x1xf32>
    %cst = arith.constant dense<0.000000e+00> : vector<50x128xf32>
    %15 = tpu.matmul %12, %10, %cst {dimension_numbers = #tpu.dot_dimension_numbers<[1], [0], [0], [1], [0, 0, 1, 1], [], []>} : vector<50x50xf32>, vector<50x128xf32>, vector<50x128xf32> -> vector<50x128xf32>
    %16 = vector.broadcast %14 : vector<50x1xf32> to vector<50x128xf32>
    %17 = arith.addf %15, %16 : vector<50x128xf32>
    %18 = math.tanh %17 : vector<50x128xf32>
    %c1_11 = arith.constant 1 : index
    %c0_12 = arith.constant 0 : index
    %c0_13 = arith.constant 0 : index
    %19 = vector.load %arg2[%c1_11, %c0_12, %c0_13] : memref<4x50x50xf32, #tpu.memory_space<vmem>>, vector<1x50x50xf32>
    %20 = vector.shape_cast %19 : vector<1x50x50xf32> to vector<50x50xf32>
    %c3 = arith.constant 3 : index
    %c0_14 = arith.constant 0 : index
    %c0_15 = arith.constant 0 : index
    %21 = vector.load %arg3[%c3, %c0_14, %c0_15] : memref<7x50x1xf32, #tpu.memory_space<vmem>>, vector<1x50x1xf32>
    %22 = vector.shape_cast %21 : vector<1x50x1xf32> to vector<50x1xf32>
    %cst_16 = arith.constant dense<0.000000e+00> : vector<50x128xf32>
    %23 = tpu.matmul %20, %18, %cst_16 {dimension_numbers = #tpu.dot_dimension_numbers<[1], [0], [0], [1], [0, 0, 1, 1], [], []>} : vector<50x50xf32>, vector<50x128xf32>, vector<50x128xf32> -> vector<50x128xf32>
    %24 = vector.broadcast %22 : vector<50x1xf32> to vector<50x128xf32>
    %25 = arith.addf %23, %24 : vector<50x128xf32>
    %26 = math.tanh %25 : vector<50x128xf32>
    %c2_17 = arith.constant 2 : index
    %c0_18 = arith.constant 0 : index
    %c0_19 = arith.constant 0 : index
    %27 = vector.load %arg2[%c2_17, %c0_18, %c0_19] : memref<4x50x50xf32, #tpu.memory_space<vmem>>, vector<1x50x50xf32>
    %28 = vector.shape_cast %27 : vector<1x50x50xf32> to vector<50x50xf32>
    %c4 = arith.constant 4 : index
    %c0_20 = arith.constant 0 : index
    %c0_21 = arith.constant 0 : index
    %29 = vector.load %arg3[%c4, %c0_20, %c0_21] : memref<7x50x1xf32, #tpu.memory_space<vmem>>, vector<1x50x1xf32>
    %30 = vector.shape_cast %29 : vector<1x50x1xf32> to vector<50x1xf32>
    %cst_22 = arith.constant dense<0.000000e+00> : vector<50x128xf32>
    %31 = tpu.matmul %28, %26, %cst_22 {dimension_numbers = #tpu.dot_dimension_numbers<[1], [0], [0], [1], [0, 0, 1, 1], [], []>} : vector<50x50xf32>, vector<50x128xf32>, vector<50x128xf32> -> vector<50x128xf32>
    %32 = vector.broadcast %30 : vector<50x1xf32> to vector<50x128xf32>
    %33 = arith.addf %31, %32 : vector<50x128xf32>
    %34 = math.tanh %33 : vector<50x128xf32>
    %c3_23 = arith.constant 3 : index
    %c0_24 = arith.constant 0 : index
    %c0_25 = arith.constant 0 : index
    %35 = vector.load %arg2[%c3_23, %c0_24, %c0_25] : memref<4x50x50xf32, #tpu.memory_space<vmem>>, vector<1x50x50xf32>
    %36 = vector.shape_cast %35 : vector<1x50x50xf32> to vector<50x50xf32>
    %c5 = arith.constant 5 : index
    %c0_26 = arith.constant 0 : index
    %c0_27 = arith.constant 0 : index
    %37 = vector.load %arg3[%c5, %c0_26, %c0_27] : memref<7x50x1xf32, #tpu.memory_space<vmem>>, vector<1x50x1xf32>
    %38 = vector.shape_cast %37 : vector<1x50x1xf32> to vector<50x1xf32>
    %cst_28 = arith.constant dense<0.000000e+00> : vector<50x128xf32>
    %39 = tpu.matmul %36, %34, %cst_28 {dimension_numbers = #tpu.dot_dimension_numbers<[1], [0], [0], [1], [0, 0, 1, 1], [], []>} : vector<50x50xf32>, vector<50x128xf32>, vector<50x128xf32> -> vector<50x128xf32>
    %40 = vector.broadcast %38 : vector<50x1xf32> to vector<50x128xf32>
    %41 = arith.addf %39, %40 : vector<50x128xf32>
    %42 = math.tanh %41 : vector<50x128xf32>
    %c6 = arith.constant 6 : index
    %c0_29 = arith.constant 0 : index
    %c0_30 = arith.constant 0 : index
    %43 = vector.load %arg3[%c6, %c0_29, %c0_30] : memref<7x50x1xf32, #tpu.memory_space<vmem>>, vector<1x50x1xf32>
    %44 = vector.shape_cast %43 : vector<1x50x1xf32> to vector<50x1xf32>
    %45 = vector.broadcast %44 : vector<50x1xf32> to vector<50x128xf32>
    %46 = arith.mulf %45, %42 : vector<50x128xf32>
    %cst_31 = arith.constant dense<0.000000e+00> : vector<128xf32>
    %47 = vector.multi_reduction <add>, %46, %cst_31 [0] : vector<50x128xf32> to vector<128xf32>
    %48 = vector.shape_cast %47 : vector<128xf32> to vector<1x128xf32>
    %c0_32 = arith.constant 0 : index
    %c0_33 = arith.constant 0 : index
    %49 = vector.load %arg4[%c0_32, %c0_33] : memref<1x1xf32, #tpu.memory_space<vmem>>, vector<1x1xf32>
    %50 = vector.broadcast %49 : vector<1x1xf32> to vector<1x128xf32>
    %51 = arith.addf %48, %50 : vector<1x128xf32>
    %c0_34 = arith.constant 0 : index
    %c0_35 = arith.constant 0 : index
    %52 = vector.load %arg5[%c0_34, %c0_35] : memref<1x128xf32, #tpu.memory_space<vmem>>, vector<1x128xf32>
    tpu.vector_store %arg5[%c0_34, %c0_35], %51 {strides = array<i32>} : memref<1x128xf32, #tpu.memory_space<vmem>>, vector<1x128xf32>,
    return
  }
  func.func @transform_0(%arg0: i32) -> (i32, i32) {
    %c0_i32 = arith.constant 0 : i32
    %c0_i32_0 = arith.constant 0 : i32
    return %c0_i32, %arg0 : i32, i32
  }
  func.func @transform_1(%arg0: i32) -> (i32, i32, i32) {
    %c0_i32 = arith.constant 0 : i32
    %c0_i32_0 = arith.constant 0 : i32
    %c0_i32_1 = arith.constant 0 : i32
    %c0_i32_2 = arith.constant 0 : i32
    return %c0_i32, %c0_i32_0, %c0_i32_1 : i32, i32, i32
  }
  func.func @transform_2(%arg0: i32) -> (i32, i32, i32) {
    %c0_i32 = arith.constant 0 : i32
    %c0_i32_0 = arith.constant 0 : i32
    %c0_i32_1 = arith.constant 0 : i32
    %c0_i32_2 = arith.constant 0 : i32
    return %c0_i32, %c0_i32_0, %c0_i32_1 : i32, i32, i32
  }
  func.func @transform_3(%arg0: i32) -> (i32, i32) {
    %c0_i32 = arith.constant 0 : i32
    %c0_i32_0 = arith.constant 0 : i32
    %c0_i32_1 = arith.constant 0 : i32
    return %c0_i32, %c0_i32_0 : i32, i32
  }
  func.func @transform_4(%arg0: i32) -> (i32, i32) {
    %c0_i32 = arith.constant 0 : i32
    %c0_i32_0 = arith.constant 0 : i32
    return %c0_i32, %arg0 : i32, i32
  }
}

</mosaic_0001>

<llo_original>
// kernel: tpu_custom_call.1
$region0: #{tpu_custom_call.1}
  #allocation0 [shape = 'u32[]', space=smem, size = 0x4, offset = 0x4, fixed_abs, tag = 'smem constant byte address 0x4 - core index']
  #allocation1 [shape = 'u32[144,128]{1,0:T(1,128)}', space=vmem, size = 0x12000, scoped, tag = 'internal scratch']
  #allocation2 [shape = 'f32[1,1]{1,0:T(1,128)S(1)}', space=vmem, size = 0x200, scoped, tag = 'scoped memory for tpu_custom_call.1']
  %s0 = inlined_call_operand.vmem [shape: f32[1,128], index: 0, kind: input, shape index: {}]
  %s1 = inlined_call_operand.vmem [shape: f32[4,50,50], index: 1, kind: input, shape index: {}]
  %s2 = inlined_call_operand.vmem [shape: f32[7,50,1], index: 2, kind: input, shape index: {}]
  %s3 = inlined_call_operand.<no memory space> [shape: f32[1,1], index: 3, kind: input, shape index: {}]
  %s4 = inlined_call_operand.hbm [shape: f32[1,128], index: 4, kind: output, shape index: {}]
  %s5 = sld [smem:[#allocation0]]
  $region26: #{tpu_custom_call.1} parent=0
    _
  %s7 = ssub.s32 1, %s5
  %s8 = scalar_select 0, %s7, %s5
  %v9 = vstv %s3
  %10 = vst [vmem:[#allocation2] sm:$0x1] %v9
  $region1: #{tpu_custom_call.1} parent=0
    #allocation3 [shape = 'u8[512]{0}', space=vmem, size = 0x400, scoped, tag = 'output window, operand 0, single buffered']
    #allocation4 [shape = 's32[1]{0}', space=sflag, size = 0x4, scoped, tag = 'scoped memory for tpu_custom_call.1']
    %11 = vsyncpa [#allocation4], 0
    // Predicated region
    $region2: #{tpu_custom_call.1} parent=1 // pred_check
      _
    $region3: #{tpu_custom_call.1} parent=1 // pred_check_branch
      %13 = sbr.rel (0) target = $region5
    $region4: #{tpu_custom_call.1} parent=1 // pred_region
      _
    $region5: #{tpu_custom_call.1} parent=1 // pred_fallthru
      _
    // Predicated region
    $region6: #{tpu_custom_call.1} parent=1 // pred_check
      _
    $region7: #{tpu_custom_call.1} parent=1 // pred_check_branch
      %15 = sbr.rel (0) target = $region9
    $region8: #{tpu_custom_call.1} parent=1 // pred_region
      _
    $region9: #{tpu_custom_call.1} parent=1 // pred_fallthru
      _
    // Predicated region
    $region10: #{tpu_custom_call.1} parent=1 // pred_check
      _
    $region11: #{tpu_custom_call.1} parent=1 // pred_check_branch
      %17 = sbr.rel (0) target = $region13
    $region12: #{tpu_custom_call.1} parent=1 // pred_region
      _
    $region13: #{tpu_custom_call.1} parent=1 // pred_fallthru
      _
    // Predicated region
    $region14: #{tpu_custom_call.1} parent=1 // pred_check
      _
    $region15: #{tpu_custom_call.1} parent=1 // pred_check_branch
      %19 = sbr.rel (0) target = $region17
    $region16: #{tpu_custom_call.1} parent=1 // pred_region
      _
    $region17: #{tpu_custom_call.1} parent=1 // pred_fallthru
      _
    %v20 = vld [vmem:[%s0] sm:$0x1]
    %v21 = vld [vmem:[%s2] sm:$0xff]
    %v22 = vld [vmem:[%s2 + $0x8] sm:$0xff]
    %v23 = vld [vmem:[%s2 + $0x10] sm:$0xff]
    %v24 = vld [vmem:[%s2 + $0x18] sm:$0xff]
    %v25 = vld [vmem:[%s2 + $0x20] sm:$0xff]
    %v26 = vld [vmem:[%s2 + $0x28] sm:$0xff]
    %v27 = vld [vmem:[%s2 + $0x30] sm:$0x3]
    %s28 = scalar_lea.vmem %s2, 56
    %v29 = vld [vmem:[%s28] sm:$0xff]
    %v30 = vld [vmem:[%s28 + $0x8] sm:$0xff]
    %v31 = vld [vmem:[%s28 + $0x10] sm:$0xff]
    %v32 = vld [vmem:[%s28 + $0x18] sm:$0xff]
    %v33 = vld [vmem:[%s28 + $0x20] sm:$0xff]
    %v34 = vld [vmem:[%s28 + $0x28] sm:$0xff]
    %v35 = vld [vmem:[%s28 + $0x30] sm:$0x3]
    %37 = vset.pattern.permute.xlu0 0
    %38 = vperm.xlu0 %37, %v21
    %v39 = vpop.permute.xlu0 %38
    %42 = vset.pattern.permute.xlu0 0
    %43 = vperm.xlu0 %42, %v22
    %v44 = vpop.permute.xlu0 %43
    %47 = vset.pattern.permute.xlu0 0
    %48 = vperm.xlu0 %47, %v23
    %v49 = vpop.permute.xlu0 %48
    %52 = vset.pattern.permute.xlu0 0
    %53 = vperm.xlu0 %52, %v24
    %v54 = vpop.permute.xlu0 %53
    %57 = vset.pattern.permute.xlu0 0
    %58 = vperm.xlu0 %57, %v25
    %v59 = vpop.permute.xlu0 %58
    %62 = vset.pattern.permute.xlu0 0
    %63 = vperm.xlu0 %62, %v26
    %v64 = vpop.permute.xlu0 %63
    %67 = vset.pattern.permute.xlu0 0
    %68 = vperm.xlu0 %67, %v27
    %v69 = vpop.permute.xlu0 %68
    %v72 = vlaneseq
    %v73 = vshrl.u32 %v72, 7
    %v74 = vsub.s32 0, %v73
    %v75 = vrot.slane %v20, %v74
    %v77 = vmul.f32 %v39, %v75
    %v78 = vmul.f32 %v44, %v75
    %v79 = vmul.f32 %v49, %v75
    %v80 = vmul.f32 %v54, %v75
    %v81 = vmul.f32 %v59, %v75
    %v82 = vmul.f32 %v64, %v75
    %v83 = vmul.f32 %v69, %v75
    %85 = vset.pattern.permute.xlu0 0
    %86 = vperm.xlu0 %85, %v29
    %v87 = vpop.permute.xlu0 %86
    %90 = vset.pattern.permute.xlu0 0
    %91 = vperm.xlu0 %90, %v30
    %v92 = vpop.permute.xlu0 %91
    %95 = vset.pattern.permute.xlu0 0
    %96 = vperm.xlu0 %95, %v31
    %v97 = vpop.permute.xlu0 %96
    %100 = vset.pattern.permute.xlu0 0
    %101 = vperm.xlu0 %100, %v32
    %v102 = vpop.permute.xlu0 %101
    %105 = vset.pattern.permute.xlu0 0
    %106 = vperm.xlu0 %105, %v33
    %v107 = vpop.permute.xlu0 %106
    %110 = vset.pattern.permute.xlu0 0
    %111 = vperm.xlu0 %110, %v34
    %v112 = vpop.permute.xlu0 %111
    %115 = vset.pattern.permute.xlu0 0
    %116 = vperm.xlu0 %115, %v35
    %v117 = vpop.permute.xlu0 %116
    %v119 = vadd.f32 %v77, %v87
    %v120 = vadd.f32 %v78, %v92
    %v121 = vadd.f32 %v79, %v97
    %v122 = vadd.f32 %v80, %v102
    %v123 = vadd.f32 %v81, %v107
    %v124 = vadd.f32 %v82, %v112
    %v125 = vadd.f32 %v83, %v117
    %v126 = vtanh.pop %v119
    %v127 = vtanh.pop %v120
    %v128 = vtanh.pop %v121
    %v129 = vtanh.pop %v122
    %v130 = vtanh.pop %v123
    %v131 = vtanh.pop %v124
    %v132 = vtanh.pop %v125
    %v133 = vld [vmem:[%s1] sm:$0xff]
    %v134 = vld [vmem:[%s1 + $0x8] sm:$0xff]
    %v135 = vld [vmem:[%s1 + $0x10] sm:$0xff]
    %v136 = vld [vmem:[%s1 + $0x18] sm:$0xff]
    %v137 = vld [vmem:[%s1 + $0x20] sm:$0xff]
    %v138 = vld [vmem:[%s1 + $0x28] sm:$0xff]
    %v139 = vld [vmem:[%s1 + $0x30] sm:$0x3]
    %s140 = scalar_lea.vmem %s2, 112
    %v141 = vld [vmem:[%s140] sm:$0xff]
    %v142 = vld [vmem:[%s140 + $0x8] sm:$0xff]
    %v143 = vld [vmem:[%s140 + $0x10] sm:$0xff]
    %v144 = vld [vmem:[%s140 + $0x18] sm:$0xff]
    %v145 = vld [vmem:[%s140 + $0x20] sm:$0xff]
    %v146 = vld [vmem:[%s140 + $0x28] sm:$0xff]
    %v147 = vld [vmem:[%s140 + $0x30] sm:$0x3]
    %149 = vset.pattern.permute.xlu0 0
    %150 = vperm.xlu0 %149, %v141
    %v151 = vpop.permute.xlu0 %150
    %154 = vset.pattern.permute.xlu0 0
    %155 = vperm.xlu0 %154, %v142
    %v156 = vpop.permute.xlu0 %155
    %159 = vset.pattern.permute.xlu0 0
    %160 = vperm.xlu0 %159, %v143
    %v161 = vpop.permute.xlu0 %160
    %164 = vset.pattern.permute.xlu0 0
    %165 = vperm.xlu0 %164, %v144
    %v166 = vpop.permute.xlu0 %165
    %169 = vset.pattern.permute.xlu0 0
    %170 = vperm.xlu0 %169, %v145
    %v171 = vpop.permute.xlu0 %170
    %174 = vset.pattern.permute.xlu0 0
    %175 = vperm.xlu0 %174, %v146
    %v176 = vpop.permute.xlu0 %175
    %179 = vset.pattern.permute.xlu0 0
    %180 = vperm.xlu0 %179, %v147
    %v181 = vpop.permute.xlu0 %180
    %vm183 = vcmask 408576
    %v185 = vsel %vm183, %v133, 0
    %v188 = vsel %vm183, %v134, 0
    %v191 = vsel %vm183, %v135, 0
    %v194 = vsel %vm183, %v136, 0
    %v197 = vsel %vm183, %v137, 0
    %v200 = vsel %vm183, %v138, 0
    %v203 = vsel %vm183, %v139, 0
    %vm205 = vcmask 1041408
    %v207 = vsel %vm205, %v132, 0
    %209 = vmatprep.subr.mxu0 0.0
    %210 = vmatpush1.msra.mxu0 %v126
    %211 = vmatprep.subr.mxu0 0.0
    %212 = vmatpush1.msra.mxu0 %v127
    %213 = vmatprep.subr.mxu0 0.0
    %214 = vmatpush1.msra.mxu0 %v128
    %215 = vmatprep.subr.mxu0 0.0
    %216 = vmatpush1.msra.mxu0 %v129
    %217 = vmatprep.subr.mxu0 0.0
    %218 = vmatpush1.msra.mxu0 %v130
    %219 = vmatprep.subr.mxu0 0.0
    %220 = vmatpush1.msra.mxu0 %v131
    %221 = vmatprep.subr.mxu0 0.0
    %222 = vmatpush1.msra.mxu0 %v207
    %223 = vmatprep.subr.mxu0 0.0
    %224 = vmatpush1.msra.mxu0 0.0
    %225 = vmatprep.subr.mxu0 0.0
    %226 = vmatpush1.msra.mxu0 0.0
    %227 = vmatprep.subr.mxu0 0.0
    %228 = vmatpush1.msra.mxu0 0.0
    %229 = vmatprep.subr.mxu0 0.0
    %230 = vmatpush1.msra.mxu0 0.0
    %231 = vmatprep.subr.mxu0 0.0
    %232 = vmatpush1.msra.mxu0 0.0
    %233 = vmatprep.subr.mxu0 0.0
    %234 = vmatpush1.msra.mxu0 0.0
    %235 = vmatprep.subr.mxu0 0.0
    %236 = vmatpush1.msra.mxu0 0.0
    %237 = vmatprep.subr.mxu0 0.0
    %238 = vmatpush1.msra.mxu0 0.0
    %239 = vmatprep.subr.mxu0 0.0
    %240 = vmatpush1.msra.mxu0 0.0
    %241 = vmatprep.subr.mxu0 0.0
    %242 = vmatpush1.msra.mxu0 0.0
    %243 = vmatprep.subr.mxu0 0.0
    %244 = vmatpush1.msra.mxu0 0.0
    %245 = vmatprep.subr.mxu0 0.0
    %246 = vmatpush1.msra.mxu0 0.0
    %247 = vmatprep.subr.mxu0 0.0
    %248 = vmatpush1.msra.mxu0 0.0
    %249 = vmatprep.subr.mxu0 0.0
    %250 = vmatpush1.msra.mxu0 0.0
    %251 = vmatprep.subr.mxu0 0.0
    %252 = vmatpush1.msra.mxu0 0.0
    %253 = vmatprep.subr.mxu0 0.0
    %254 = vmatpush1.msra.mxu0 0.0
    %255 = vmatprep.subr.mxu0 0.0
    %256 = vmatpush1.msra.mxu0 0.0
    %257 = vmatprep.subr.mxu0 0.0
    %258 = vmatpush1.msra.mxu0 0.0
    %259 = vmatprep.subr.mxu0 0.0
    %260 = vmatpush1.msra.mxu0 0.0
    %261 = vmatprep.subr.mxu0 0.0
    %262 = vmatpush1.msra.mxu0 0.0
    %263 = vmatprep.subr.mxu0 0.0
    %264 = vmatpush1.msra.mxu0 0.0
    %265 = vmatprep.subr.mxu0 0.0
    %266 = vmatpush1.msra.mxu0 0.0
    %267 = vmatprep.subr.mxu0 0.0
    %268 = vmatpush1.msra.mxu0 0.0
    %269 = vmatprep.subr.mxu0 0.0
    %270 = vmatpush1.msra.mxu0 0.0
    %271 = vmatprep.subr.mxu0 0.0
    %272 = vmatpush1.msra.mxu0 0.0
    %273 = vmatprep.mubr.f32.mxu0 0.0
    %274 = vmatmul.mubr.f32.gmra.mrb[0].mxu0 %v185
    %v275 = vpop.f32.mrb[0].mxu0
    %v276 = vadd.f32 %v151, %v275
    %v277 = vpop.f32.mrb[0].mxu0
    %278 = vmatprep.mubr.f32.mxu0 0.0
    %279 = vmatmul.mubr.f32.gmra.mrb[0].mxu0 %v188
    %v280 = vpop.f32.mrb[0].mxu0
    %v281 = vadd.f32 %v156, %v280
    %v282 = vpop.f32.mrb[0].mxu0
    %283 = vmatprep.mubr.f32.mxu0 0.0
    %284 = vmatmul.mubr.f32.gmra.mrb[0].mxu0 %v191
    %v285 = vpop.f32.mrb[0].mxu0
    %v286 = vadd.f32 %v161, %v285
    %v287 = vpop.f32.mrb[0].mxu0
    %288 = vmatprep.mubr.f32.mxu0 0.0
    %289 = vmatmul.mubr.f32.gmra.mrb[0].mxu0 %v194
    %v290 = vpop.f32.mrb[0].mxu0
    %v291 = vadd.f32 %v166, %v290
    %v292 = vpop.f32.mrb[0].mxu0
    %293 = vmatprep.mubr.f32.mxu0 0.0
    %294 = vmatmul.mubr.f32.gmra.mrb[0].mxu0 %v197
    %v295 = vpop.f32.mrb[0].mxu0
    %v296 = vadd.f32 %v171, %v295
    %v297 = vpop.f32.mrb[0].mxu0
    %298 = vmatprep.mubr.f32.mxu0 0.0
    %299 = vmatmul.mubr.f32.gmra.mrb[0].mxu0 %v200
    %v300 = vpop.f32.mrb[0].mxu0
    %v301 = vadd.f32 %v176, %v300
    %v302 = vpop.f32.mrb[0].mxu0
    %303 = vmatprep.mubr.f32.mxu0 0.0
    %304 = vmatmul.mubr.f32.gmra.mrb[0].mxu0 %v203
    %v305 = vpop.f32.mrb[0].mxu0
    %v306 = vadd.f32 %v181, %v305
    %v307 = vpop.f32.mrb[0].mxu0
    %308 = vdwg.mxu0
    %v309 = vtanh.pop %v276
    %v310 = vtanh.pop %v281
    %v311 = vtanh.pop %v286
    %v312 = vtanh.pop %v291
    %v313 = vtanh.pop %v296
    %v314 = vtanh.pop %v301
    %v315 = vtanh.pop %v306
    %s316 = scalar_lea.vmem %s1, 56
    %v317 = vld [vmem:[%s316] sm:$0xff]
    %v318 = vld [vmem:[%s316 + $0x8] sm:$0xff]
    %v319 = vld [vmem:[%s316 + $0x10] sm:$0xff]
    %v320 = vld [vmem:[%s316 + $0x18] sm:$0xff]
    %v321 = vld [vmem:[%s316 + $0x20] sm:$0xff]
    %v322 = vld [vmem:[%s316 + $0x28] sm:$0xff]
    %v323 = vld [vmem:[%s316 + $0x30] sm:$0x3]
    %s324 = scalar_lea.vmem %s2, 168
    %v325 = vld [vmem:[%s324] sm:$0xff]
    %v326 = vld [vmem:[%s324 + $0x8] sm:$0xff]
    %v327 = vld [vmem:[%s324 + $0x10] sm:$0xff]
    %v328 = vld [vmem:[%s324 + $0x18] sm:$0xff]
    %v329 = vld [vmem:[%s324 + $0x20] sm:$0xff]
    %v330 = vld [vmem:[%s324 + $0x28] sm:$0xff]
    %v331 = vld [vmem:[%s324 + $0x30] sm:$0x3]
    %333 = vset.pattern.permute.xlu0 0
    %334 = vperm.xlu0 %333, %v325
    %v335 = vpop.permute.xlu0 %334
    %338 = vset.pattern.permute.xlu0 0
    %339 = vperm.xlu0 %338, %v326
    %v340 = vpop.permute.xlu0 %339
    %343 = vset.pattern.permute.xlu0 0
    %344 = vperm.xlu0 %343, %v327
    %v345 = vpop.permute.xlu0 %344
    %348 = vset.pattern.permute.xlu0 0
    %349 = vperm.xlu0 %348, %v328
    %v350 = vpop.permute.xlu0 %349
    %353 = vset.pattern.permute.xlu0 0
    %354 = vperm.xlu0 %353, %v329
    %v355 = vpop.permute.xlu0 %354
    %358 = vset.pattern.permute.xlu0 0
    %359 = vperm.xlu0 %358, %v330
    %v360 = vpop.permute.xlu0 %359
    %363 = vset.pattern.permute.xlu0 0
    %364 = vperm.xlu0 %363, %v331
    %v365 = vpop.permute.xlu0 %364
    %v368 = vsel %vm183, %v317, 0
    %v371 = vsel %vm183, %v318, 0
    %v374 = vsel %vm183, %v319, 0
    %v377 = vsel %vm183, %v320, 0
    %v380 = vsel %vm183, %v321, 0
    %v383 = vsel %vm183, %v322, 0
    %v386 = vsel %vm183, %v323, 0
    %v389 = vsel %vm205, %v315, 0
    %391 = vmatprep.subr.mxu0 0.0
    %392 = vmatpush1.msra.mxu0 %v309
    %393 = vmatprep.subr.mxu0 0.0
    %394 = vmatpush1.msra.mxu0 %v310
    %395 = vmatprep.subr.mxu0 0.0
    %396 = vmatpush1.msra.mxu0 %v311
    %397 = vmatprep.subr.mxu0 0.0
    %398 = vmatpush1.msra.mxu0 %v312
    %399 = vmatprep.subr.mxu0 0.0
    %400 = vmatpush1.msra.mxu0 %v313
    %401 = vmatprep.subr.mxu0 0.0
    %402 = vmatpush1.msra.mxu0 %v314
    %403 = vmatprep.subr.mxu0 0.0
    %404 = vmatpush1.msra.mxu0 %v389
    %405 = vmatprep.subr.mxu0 0.0
    %406 = vmatpush1.msra.mxu0 0.0
    %407 = vmatprep.subr.mxu0 0.0
    %408 = vmatpush1.msra.mxu0 0.0
    %409 = vmatprep.subr.mxu0 0.0
    %410 = vmatpush1.msra.mxu0 0.0
    %411 = vmatprep.subr.mxu0 0.0
    %412 = vmatpush1.msra.mxu0 0.0
    %413 = vmatprep.subr.mxu0 0.0
    %414 = vmatpush1.msra.mxu0 0.0
    %415 = vmatprep.subr.mxu0 0.0
    %416 = vmatpush1.msra.mxu0 0.0
    %417 = vmatprep.subr.mxu0 0.0
    %418 = vmatpush1.msra.mxu0 0.0
    %419 = vmatprep.subr.mxu0 0.0
    %420 = vmatpush1.msra.mxu0 0.0
    %421 = vmatprep.subr.mxu0 0.0
    %422 = vmatpush1.msra.mxu0 0.0
    %423 = vmatprep.subr.mxu0 0.0
    %424 = vmatpush1.msra.mxu0 0.0
    %425 = vmatprep.subr.mxu0 0.0
    %426 = vmatpush1.msra.mxu0 0.0
    %427 = vmatprep.subr.mxu0 0.0
    %428 = vmatpush1.msra.mxu0 0.0
    %429 = vmatprep.subr.mxu0 0.0
    %430 = vmatpush1.msra.mxu0 0.0
    %431 = vmatprep.subr.mxu0 0.0
    %432 = vmatpush1.msra.mxu0 0.0
    %433 = vmatprep.subr.mxu0 0.0
    %434 = vmatpush1.msra.mxu0 0.0
    %435 = vmatprep.subr.mxu0 0.0
    %436 = vmatpush1.msra.mxu0 0.0
    %437 = vmatprep.subr.mxu0 0.0
    %438 = vmatpush1.msra.mxu0 0.0
    %439 = vmatprep.subr.mxu0 0.0
    %440 = vmatpush1.msra.mxu0 0.0
    %441 = vmatprep.subr.mxu0 0.0
    %442 = vmatpush1.msra.mxu0 0.0
    %443 = vmatprep.subr.mxu0 0.0
    %444 = vmatpush1.msra.mxu0 0.0
    %445 = vmatprep.subr.mxu0 0.0
    %446 = vmatpush1.msra.mxu0 0.0
    %447 = vmatprep.subr.mxu0 0.0
    %448 = vmatpush1.msra.mxu0 0.0
    %449 = vmatprep.subr.mxu0 0.0
    %450 = vmatpush1.msra.mxu0 0.0
    %451 = vmatprep.subr.mxu0 0.0
    %452 = vmatpush1.msra.mxu0 0.0
    %453 = vmatprep.subr.mxu0 0.0
    %454 = vmatpush1.msra.mxu0 0.0
    %455 = vmatprep.mubr.f32.mxu0 0.0
    %456 = vmatmul.mubr.f32.gmra.mrb[0].mxu0 %v368
    %v457 = vpop.f32.mrb[0].mxu0
    %v458 = vadd.f32 %v335, %v457
    %v459 = vpop.f32.mrb[0].mxu0
    %460 = vmatprep.mubr.f32.mxu0 0.0
    %461 = vmatmul.mubr.f32.gmra.mrb[0].mxu0 %v371
    %v462 = vpop.f32.mrb[0].mxu0
    %v463 = vadd.f32 %v340, %v462
    %v464 = vpop.f32.mrb[0].mxu0
    %465 = vmatprep.mubr.f32.mxu0 0.0
    %466 = vmatmul.mubr.f32.gmra.mrb[0].mxu0 %v374
    %v467 = vpop.f32.mrb[0].mxu0
    %v468 = vadd.f32 %v345, %v467
    %v469 = vpop.f32.mrb[0].mxu0
    %470 = vmatprep.mubr.f32.mxu0 0.0
    %471 = vmatmul.mubr.f32.gmra.mrb[0].mxu0 %v377
    %v472 = vpop.f32.mrb[0].mxu0
    %v473 = vadd.f32 %v350, %v472
    %v474 = vpop.f32.mrb[0].mxu0
    %475 = vmatprep.mubr.f32.mxu0 0.0
    %476 = vmatmul.mubr.f32.gmra.mrb[0].mxu0 %v380
    %v477 = vpop.f32.mrb[0].mxu0
    %v478 = vadd.f32 %v355, %v477
    %v479 = vpop.f32.mrb[0].mxu0
    %480 = vmatprep.mubr.f32.mxu0 0.0
    %481 = vmatmul.mubr.f32.gmra.mrb[0].mxu0 %v383
    %v482 = vpop.f32.mrb[0].mxu0
    %v483 = vadd.f32 %v360, %v482
    %v484 = vpop.f32.mrb[0].mxu0
    %485 = vmatprep.mubr.f32.mxu0 0.0
    %486 = vmatmul.mubr.f32.gmra.mrb[0].mxu0 %v386
    %v487 = vpop.f32.mrb[0].mxu0
    %v488 = vadd.f32 %v365, %v487
    %v489 = vpop.f32.mrb[0].mxu0
    %490 = vdwg.mxu0
    %v491 = vtanh.pop %v458
    %v492 = vtanh.pop %v463
    %v493 = vtanh.pop %v468
    %v494 = vtanh.pop %v473
    %v495 = vtanh.pop %v478
    %v496 = vtanh.pop %v483
    %v497 = vtanh.pop %v488
    %s498 = scalar_lea.vmem %s1, 112
    %v499 = vld [vmem:[%s498] sm:$0xff]
    %v500 = vld [vmem:[%s498 + $0x8] sm:$0xff]
    %v501 = vld [vmem:[%s498 + $0x10] sm:$0xff]
    %v502 = vld [vmem:[%s498 + $0x18] sm:$0xff]
    %v503 = vld [vmem:[%s498 + $0x20] sm:$0xff]
    %v504 = vld [vmem:[%s498 + $0x28] sm:$0xff]
    %v505 = vld [vmem:[%s498 + $0x30] sm:$0x3]
    %s506 = scalar_lea.vmem %s2, 224
    %v507 = vld [vmem:[%s506] sm:$0xff]
    %v508 = vld [vmem:[%s506 + $0x8] sm:$0xff]
    %v509 = vld [vmem:[%s506 + $0x10] sm:$0xff]
    %v510 = vld [vmem:[%s506 + $0x18] sm:$0xff]
    %v511 = vld [vmem:[%s506 + $0x20] sm:$0xff]
    %v512 = vld [vmem:[%s506 + $0x28] sm:$0xff]
    %v513 = vld [vmem:[%s506 + $0x30] sm:$0x3]
    %515 = vset.pattern.permute.xlu0 0
    %516 = vperm.xlu0 %515, %v507
    %v517 = vpop.permute.xlu0 %516
    %520 = vset.pattern.permute.xlu0 0
    %521 = vperm.xlu0 %520, %v508
    %v522 = vpop.permute.xlu0 %521
    %525 = vset.pattern.permute.xlu0 0
    %526 = vperm.xlu0 %525, %v509
    %v527 = vpop.permute.xlu0 %526
    %530 = vset.pattern.permute.xlu0 0
    %531 = vperm.xlu0 %530, %v510
    %v532 = vpop.permute.xlu0 %531
    %535 = vset.pattern.permute.xlu0 0
    %536 = vperm.xlu0 %535, %v511
    %v537 = vpop.permute.xlu0 %536
    %540 = vset.pattern.permute.xlu0 0
    %541 = vperm.xlu0 %540, %v512
    %v542 = vpop.permute.xlu0 %541
    %545 = vset.pattern.permute.xlu0 0
    %546 = vperm.xlu0 %545, %v513
    %v547 = vpop.permute.xlu0 %546
    %v550 = vsel %vm183, %v499, 0
    %v553 = vsel %vm183, %v500, 0
    %v556 = vsel %vm183, %v501, 0
    %v559 = vsel %vm183, %v502, 0
    %v562 = vsel %vm183, %v503, 0
    %v565 = vsel %vm183, %v504, 0
    %v568 = vsel %vm183, %v505, 0
    %v571 = vsel %vm205, %v497, 0
    %573 = vmatprep.subr.mxu0 0.0
    %574 = vmatpush1.msra.mxu0 %v491
    %575 = vmatprep.subr.mxu0 0.0
    %576 = vmatpush1.msra.mxu0 %v492
    %577 = vmatprep.subr.mxu0 0.0
    %578 = vmatpush1.msra.mxu0 %v493
    %579 = vmatprep.subr.mxu0 0.0
    %580 = vmatpush1.msra.mxu0 %v494
    %581 = vmatprep.subr.mxu0 0.0
    %582 = vmatpush1.msra.mxu0 %v495
    %583 = vmatprep.subr.mxu0 0.0
    %584 = vmatpush1.msra.mxu0 %v496
    %585 = vmatprep.subr.mxu0 0.0
    %586 = vmatpush1.msra.mxu0 %v571
    %587 = vmatprep.subr.mxu0 0.0
    %588 = vmatpush1.msra.mxu0 0.0
    %589 = vmatprep.subr.mxu0 0.0
    %590 = vmatpush1.msra.mxu0 0.0
    %591 = vmatprep.subr.mxu0 0.0
    %592 = vmatpush1.msra.mxu0 0.0
    %593 = vmatprep.subr.mxu0 0.0
    %594 = vmatpush1.msra.mxu0 0.0
    %595 = vmatprep.subr.mxu0 0.0
    %596 = vmatpush1.msra.mxu0 0.0
    %597 = vmatprep.subr.mxu0 0.0
    %598 = vmatpush1.msra.mxu0 0.0
    %599 = vmatprep.subr.mxu0 0.0
    %600 = vmatpush1.msra.mxu0 0.0
    %601 = vmatprep.subr.mxu0 0.0
    %602 = vmatpush1.msra.mxu0 0.0
    %603 = vmatprep.subr.mxu0 0.0
    %604 = vmatpush1.msra.mxu0 0.0
    %605 = vmatprep.subr.mxu0 0.0
    %606 = vmatpush1.msra.mxu0 0.0
    %607 = vmatprep.subr.mxu0 0.0
    %608 = vmatpush1.msra.mxu0 0.0
    %609 = vmatprep.subr.mxu0 0.0
    %610 = vmatpush1.msra.mxu0 0.0
    %611 = vmatprep.subr.mxu0 0.0
    %612 = vmatpush1.msra.mxu0 0.0
    %613 = vmatprep.subr.mxu0 0.0
    %614 = vmatpush1.msra.mxu0 0.0
    %615 = vmatprep.subr.mxu0 0.0
    %616 = vmatpush1.msra.mxu0 0.0
    %617 = vmatprep.subr.mxu0 0.0
    %618 = vmatpush1.msra.mxu0 0.0
    %619 = vmatprep.subr.mxu0 0.0
    %620 = vmatpush1.msra.mxu0 0.0
    %621 = vmatprep.subr.mxu0 0.0
    %622 = vmatpush1.msra.mxu0 0.0
    %623 = vmatprep.subr.mxu0 0.0
    %624 = vmatpush1.msra.mxu0 0.0
    %625 = vmatprep.subr.mxu0 0.0
    %626 = vmatpush1.msra.mxu0 0.0
    %627 = vmatprep.subr.mxu0 0.0
    %628 = vmatpush1.msra.mxu0 0.0
    %629 = vmatprep.subr.mxu0 0.0
    %630 = vmatpush1.msra.mxu0 0.0
    %631 = vmatprep.subr.mxu0 0.0
    %632 = vmatpush1.msra.mxu0 0.0
    %633 = vmatprep.subr.mxu0 0.0
    %634 = vmatpush1.msra.mxu0 0.0
    %635 = vmatprep.subr.mxu0 0.0
    %636 = vmatpush1.msra.mxu0 0.0
    %637 = vmatprep.mubr.f32.mxu0 0.0
    %638 = vmatmul.mubr.f32.gmra.mrb[0].mxu0 %v550
    %v639 = vpop.f32.mrb[0].mxu0
    %v640 = vadd.f32 %v517, %v639
    %v641 = vpop.f32.mrb[0].mxu0
    %642 = vmatprep.mubr.f32.mxu0 0.0
    %643 = vmatmul.mubr.f32.gmra.mrb[0].mxu0 %v553
    %v644 = vpop.f32.mrb[0].mxu0
    %v645 = vadd.f32 %v522, %v644
    %v646 = vpop.f32.mrb[0].mxu0
    %647 = vmatprep.mubr.f32.mxu0 0.0
    %648 = vmatmul.mubr.f32.gmra.mrb[0].mxu0 %v556
    %v649 = vpop.f32.mrb[0].mxu0
    %v650 = vadd.f32 %v527, %v649
    %v651 = vpop.f32.mrb[0].mxu0
    %652 = vmatprep.mubr.f32.mxu0 0.0
    %653 = vmatmul.mubr.f32.gmra.mrb[0].mxu0 %v559
    %v654 = vpop.f32.mrb[0].mxu0
    %v655 = vadd.f32 %v532, %v654
    %v656 = vpop.f32.mrb[0].mxu0
    %657 = vmatprep.mubr.f32.mxu0 0.0
    %658 = vmatmul.mubr.f32.gmra.mrb[0].mxu0 %v562
    %v659 = vpop.f32.mrb[0].mxu0
    %v660 = vadd.f32 %v537, %v659
    %v661 = vpop.f32.mrb[0].mxu0
    %662 = vmatprep.mubr.f32.mxu0 0.0
    %663 = vmatmul.mubr.f32.gmra.mrb[0].mxu0 %v565
    %v664 = vpop.f32.mrb[0].mxu0
    %v665 = vadd.f32 %v542, %v664
    %v666 = vpop.f32.mrb[0].mxu0
    %667 = vmatprep.mubr.f32.mxu0 0.0
    %668 = vmatmul.mubr.f32.gmra.mrb[0].mxu0 %v568
    %v669 = vpop.f32.mrb[0].mxu0
    %v670 = vadd.f32 %v547, %v669
    %v671 = vpop.f32.mrb[0].mxu0
    %672 = vdwg.mxu0
    %v673 = vtanh.pop %v640
    %v674 = vtanh.pop %v645
    %v675 = vtanh.pop %v650
    %v676 = vtanh.pop %v655
    %v677 = vtanh.pop %v660
    %v678 = vtanh.pop %v665
    %v679 = vtanh.pop %v670
    %s680 = scalar_lea.vmem %s1, 168
    %v681 = vld [vmem:[%s680] sm:$0xff]
    %v682 = vld [vmem:[%s680 + $0x8] sm:$0xff]
    %v683 = vld [vmem:[%s680 + $0x10] sm:$0xff]
    %v684 = vld [vmem:[%s680 + $0x18] sm:$0xff]
    %v685 = vld [vmem:[%s680 + $0x20] sm:$0xff]
    %v686 = vld [vmem:[%s680 + $0x28] sm:$0xff]
    %v687 = vld [vmem:[%s680 + $0x30] sm:$0x3]
    %s688 = scalar_lea.vmem %s2, 280
    %v689 = vld [vmem:[%s688] sm:$0xff]
    %v690 = vld [vmem:[%s688 + $0x8] sm:$0xff]
    %v691 = vld [vmem:[%s688 + $0x10] sm:$0xff]
    %v692 = vld [vmem:[%s688 + $0x18] sm:$0xff]
    %v693 = vld [vmem:[%s688 + $0x20] sm:$0xff]
    %v694 = vld [vmem:[%s688 + $0x28] sm:$0xff]
    %v695 = vld [vmem:[%s688 + $0x30] sm:$0x3]
    %697 = vset.pattern.permute.xlu0 0
    %698 = vperm.xlu0 %697, %v689
    %v699 = vpop.permute.xlu0 %698
    %702 = vset.pattern.permute.xlu0 0
    %703 = vperm.xlu0 %702, %v690
    %v704 = vpop.permute.xlu0 %703
    %707 = vset.pattern.permute.xlu0 0
    %708 = vperm.xlu0 %707, %v691
    %v709 = vpop.permute.xlu0 %708
    %712 = vset.pattern.permute.xlu0 0
    %713 = vperm.xlu0 %712, %v692
    %v714 = vpop.permute.xlu0 %713
    %717 = vset.pattern.permute.xlu0 0
    %718 = vperm.xlu0 %717, %v693
    %v719 = vpop.permute.xlu0 %718
    %722 = vset.pattern.permute.xlu0 0
    %723 = vperm.xlu0 %722, %v694
    %v724 = vpop.permute.xlu0 %723
    %727 = vset.pattern.permute.xlu0 0
    %728 = vperm.xlu0 %727, %v695
    %v729 = vpop.permute.xlu0 %728
    %v732 = vsel %vm183, %v681, 0
    %v735 = vsel %vm183, %v682, 0
    %v738 = vsel %vm183, %v683, 0
    %v741 = vsel %vm183, %v684, 0
    %v744 = vsel %vm183, %v685, 0
    %v747 = vsel %vm183, %v686, 0
    %v750 = vsel %vm183, %v687, 0
    %v753 = vsel %vm205, %v679, 0
    %755 = vmatprep.subr.mxu0 0.0
    %756 = vmatpush1.msra.mxu0 %v673
    %757 = vmatprep.subr.mxu0 0.0
    %758 = vmatpush1.msra.mxu0 %v674
    %759 = vmatprep.subr.mxu0 0.0
    %760 = vmatpush1.msra.mxu0 %v675
    %761 = vmatprep.subr.mxu0 0.0
    %762 = vmatpush1.msra.mxu0 %v676
    %763 = vmatprep.subr.mxu0 0.0
    %764 = vmatpush1.msra.mxu0 %v677
    %765 = vmatprep.subr.mxu0 0.0
    %766 = vmatpush1.msra.mxu0 %v678
    %767 = vmatprep.subr.mxu0 0.0
    %768 = vmatpush1.msra.mxu0 %v753
    %769 = vmatprep.subr.mxu0 0.0
    %770 = vmatpush1.msra.mxu0 0.0
    %771 = vmatprep.subr.mxu0 0.0
    %772 = vmatpush1.msra.mxu0 0.0
    %773 = vmatprep.subr.mxu0 0.0
    %774 = vmatpush1.msra.mxu0 0.0
    %775 = vmatprep.subr.mxu0 0.0
    %776 = vmatpush1.msra.mxu0 0.0
    %777 = vmatprep.subr.mxu0 0.0
    %778 = vmatpush1.msra.mxu0 0.0
    %779 = vmatprep.subr.mxu0 0.0
    %780 = vmatpush1.msra.mxu0 0.0
    %781 = vmatprep.subr.mxu0 0.0
    %782 = vmatpush1.msra.mxu0 0.0
    %783 = vmatprep.subr.mxu0 0.0
    %784 = vmatpush1.msra.mxu0 0.0
    %785 = vmatprep.subr.mxu0 0.0
    %786 = vmatpush1.msra.mxu0 0.0
    %787 = vmatprep.subr.mxu0 0.0
    %788 = vmatpush1.msra.mxu0 0.0
    %789 = vmatprep.subr.mxu0 0.0
    %790 = vmatpush1.msra.mxu0 0.0
    %791 = vmatprep.subr.mxu0 0.0
    %792 = vmatpush1.msra.mxu0 0.0
    %793 = vmatprep.subr.mxu0 0.0
    %794 = vmatpush1.msra.mxu0 0.0
    %795 = vmatprep.subr.mxu0 0.0
    %796 = vmatpush1.msra.mxu0 0.0
    %797 = vmatprep.subr.mxu0 0.0
    %798 = vmatpush1.msra.mxu0 0.0
    %799 = vmatprep.subr.mxu0 0.0
    %800 = vmatpush1.msra.mxu0 0.0
    %801 = vmatprep.subr.mxu0 0.0
    %802 = vmatpush1.msra.mxu0 0.0
    %803 = vmatprep.subr.mxu0 0.0
    %804 = vmatpush1.msra.mxu0 0.0
    %805 = vmatprep.subr.mxu0 0.0
    %806 = vmatpush1.msra.mxu0 0.0
    %807 = vmatprep.subr.mxu0 0.0
    %808 = vmatpush1.msra.mxu0 0.0
    %809 = vmatprep.subr.mxu0 0.0
    %810 = vmatpush1.msra.mxu0 0.0
    %811 = vmatprep.subr.mxu0 0.0
    %812 = vmatpush1.msra.mxu0 0.0
    %813 = vmatprep.subr.mxu0 0.0
    %814 = vmatpush1.msra.mxu0 0.0
    %815 = vmatprep.subr.mxu0 0.0
    %816 = vmatpush1.msra.mxu0 0.0
    %817 = vmatprep.subr.mxu0 0.0
    %818 = vmatpush1.msra.mxu0 0.0
    %819 = vmatprep.mubr.f32.mxu0 0.0
    %820 = vmatmul.mubr.f32.gmra.mrb[0].mxu0 %v732
    %v821 = vpop.f32.mrb[0].mxu0
    %v822 = vadd.f32 %v699, %v821
    %v823 = vpop.f32.mrb[0].mxu0
    %824 = vmatprep.mubr.f32.mxu0 0.0
    %825 = vmatmul.mubr.f32.gmra.mrb[0].mxu0 %v735
    %v826 = vpop.f32.mrb[0].mxu0
    %v827 = vadd.f32 %v704, %v826
    %v828 = vpop.f32.mrb[0].mxu0
    %829 = vmatprep.mubr.f32.mxu0 0.0
    %830 = vmatmul.mubr.f32.gmra.mrb[0].mxu0 %v738
    %v831 = vpop.f32.mrb[0].mxu0
    %v832 = vadd.f32 %v709, %v831
    %v833 = vpop.f32.mrb[0].mxu0
    %834 = vmatprep.mubr.f32.mxu0 0.0
    %835 = vmatmul.mubr.f32.gmra.mrb[0].mxu0 %v741
    %v836 = vpop.f32.mrb[0].mxu0
    %v837 = vadd.f32 %v714, %v836
    %v838 = vpop.f32.mrb[0].mxu0
    %839 = vmatprep.mubr.f32.mxu0 0.0
    %840 = vmatmul.mubr.f32.gmra.mrb[0].mxu0 %v744
    %v841 = vpop.f32.mrb[0].mxu0
    %v842 = vadd.f32 %v719, %v841
    %v843 = vpop.f32.mrb[0].mxu0
    %844 = vmatprep.mubr.f32.mxu0 0.0
    %845 = vmatmul.mubr.f32.gmra.mrb[0].mxu0 %v747
    %v846 = vpop.f32.mrb[0].mxu0
    %v847 = vadd.f32 %v724, %v846
    %v848 = vpop.f32.mrb[0].mxu0
    %849 = vmatprep.mubr.f32.mxu0 0.0
    %850 = vmatmul.mubr.f32.gmra.mrb[0].mxu0 %v750
    %v851 = vpop.f32.mrb[0].mxu0
    %v852 = vadd.f32 %v729, %v851
    %v853 = vpop.f32.mrb[0].mxu0
    %854 = vdwg.mxu0
    %v855 = vtanh.pop %v822
    %v856 = vtanh.pop %v827
    %v857 = vtanh.pop %v832
    %v858 = vtanh.pop %v837
    %v859 = vtanh.pop %v842
    %v860 = vtanh.pop %v847
    %v861 = vtanh.pop %v852
    %s862 = scalar_lea.vmem %s2, 336
    %v863 = vld [vmem:[%s862] sm:$0xff]
    %v864 = vld [vmem:[%s862 + $0x8] sm:$0xff]
    %v865 = vld [vmem:[%s862 + $0x10] sm:$0xff]
    %v866 = vld [vmem:[%s862 + $0x18] sm:$0xff]
    %v867 = vld [vmem:[%s862 + $0x20] sm:$0xff]
    %v868 = vld [vmem:[%s862 + $0x28] sm:$0xff]
    %v869 = vld [vmem:[%s862 + $0x30] sm:$0x3]
    %871 = vset.pattern.permute.xlu0 0
    %872 = vperm.xlu0 %871, %v863
    %v873 = vpop.permute.xlu0 %872
    %876 = vset.pattern.permute.xlu0 0
    %877 = vperm.xlu0 %876, %v864
    %v878 = vpop.permute.xlu0 %877
    %881 = vset.pattern.permute.xlu0 0
    %882 = vperm.xlu0 %881, %v865
    %v883 = vpop.permute.xlu0 %882
    %886 = vset.pattern.permute.xlu0 0
    %887 = vperm.xlu0 %886, %v866
    %v888 = vpop.permute.xlu0 %887
    %891 = vset.pattern.permute.xlu0 0
    %892 = vperm.xlu0 %891, %v867
    %v893 = vpop.permute.xlu0 %892
    %896 = vset.pattern.permute.xlu0 0
    %897 = vperm.xlu0 %896, %v868
    %v898 = vpop.permute.xlu0 %897
    %901 = vset.pattern.permute.xlu0 0
    %902 = vperm.xlu0 %901, %v869
    %v903 = vpop.permute.xlu0 %902
    %v905 = vmul.f32 %v873, %v855
    %v906 = vmul.f32 %v878, %v856
    %v907 = vmul.f32 %v883, %v857
    %v908 = vmul.f32 %v888, %v858
    %v909 = vmul.f32 %v893, %v859
    %v910 = vmul.f32 %v898, %v860
    %v911 = vmul.f32 %v903, %v861
    %v912 = vadd.f32 %v905, %v906
    %v913 = vadd.f32 %v912, %v907
    %v914 = vadd.f32 %v913, %v908
    %v915 = vadd.f32 %v914, %v909
    %v916 = vadd.f32 %v915, %v910
    %v917 = vsel %vm205, %v911, 0.0
    %v918 = vadd.f32 %v916, %v917
    %v919 = vrot.slane %v918, 4
    %v920 = vadd.f32 %v918, %v919
    %v921 = vrot.slane %v920, 2
    %v922 = vadd.f32 %v920, %v921
    %v923 = vrot.slane %v922, 1
    %v924 = vadd.f32 %v922, %v923
    %v925 = vld [vmem:[#allocation2] sm:$0x1]
    %927 = vset.pattern.permute.xlu0 0
    %928 = vperm.xlu0 %927, %v925
    %v929 = vpop.permute.xlu0 %928
    %v931 = vlaneseq
    %v932 = vshrl.u32 %v931, 7
    %v933 = vsub.s32 0, %v932
    %v934 = vrot.slane %v929, %v933
    %v935 = vadd.f32 %v924, %v934
    %936 = vst [vmem:[#allocation3] sm:$0x1] %v935
    // Predicated region
    $region18: #{tpu_custom_call.1} parent=1 // pred_check
      _
    $region19: #{tpu_custom_call.1} parent=1 // pred_check_branch
      %938 = sbr.rel (0) target = $region21
    $region20: #{tpu_custom_call.1} parent=1 // pred_region
      %s940 = ssub.s32 16, 16
      %941 = vsyncadd [#allocation4], %s940
      %s943 = sshll.u32 [#allocation3], 4
      %s944 = int_to_ptr.vmem [resolvable:$true] %s943
      %946 = dma.vmem_to_hbm [thread:$0]  %s944, 16, %s4, [#allocation4]
    $region21: #{tpu_custom_call.1} parent=1 // pred_fallthru
      _
    // Predicated region
    $region22: #{tpu_custom_call.1} parent=1 // pred_check
      _
    $region23: #{tpu_custom_call.1} parent=1 // pred_check_branch
      %948 = sbr.rel (0) target = $region25
    $region24: #{tpu_custom_call.1} parent=1 // pred_region
      %949 = dma.done [#allocation4], 16
    $region25: #{tpu_custom_call.1} parent=1 // pred_fallthru
      _
    %950 = vsyncpa [#allocation4], 1

</llo_original>
